<compile_context>
chip_gen: v5e
topology: v5e:2x2
jax: 0.10.0
libtpu: 0.0.40
codegen_flags: <defaults>
</compile_context>

<pallas_src>
import functools

import jax
import jax.numpy as jnp
from jax.experimental import pallas as pl
from jax.experimental.pallas import tpu as pltpu

_LANES = 128            # points per row of the reshaped input
_ROW_IN = 2 * _LANES    # 256 interleaved f32 values per row
_ROW_ALIGN = 8          # sublane granularity


def _fused_affine_kernel(b_ref, m_ref, x_ref, o_ref):
    # b_ref: SMEM (1,)        folded bias b_eff
    # m_ref: VMEM (256, 128)  de-interleave + affine matrix (same block every step)
    # x_ref: VMEM (Rt, 256)   Rt*128 interleaved points [x0,y0,x1,y1,...]
    # o_ref: VMEM (Rt, 128)   one output per point, lane-dense
    o_ref[...] = (
        jnp.dot(x_ref[...], m_ref[...], preferred_element_type=jnp.float32)
        + b_ref[0]
    )


@functools.partial(jax.jit, static_argnames=("rt",))
def circle_model_v1_forward(x, params, *, rt=4096):
    """Forward pass of CircleModelV1.

    x: (N, 2) array.  params: PyTorch-convention weights (out,in) / biases (out,).
    Returns (N, 1) float32 == layer_3(layer_2(layer_1(x))) up to fp32 reassociation.
    """
    n = x.shape[0]
    x = x.astype(jnp.float32)

    # --- Fold the activation-free stack into one 2->1 affine map (exact algebra). ---
    w1, b1 = params["w1"], params["b1"]
    w2, b2 = params["w2"], params["b2"]
    w3, b3 = params["w3"], params["b3"]
    w_eff = (w1.T @ w2.T @ w3.T).astype(jnp.float32)                  # (2, 1)
    b_eff = ((b1 @ w2.T + b2) @ w3.T + b3).astype(jnp.float32)        # (1,)

    # De-interleave+affine matrix: column k picks (w0, w1) from lanes 2k, 2k+1.
    m = jnp.kron(jnp.eye(_LANES, dtype=jnp.float32), w_eff)           # (256, 128)

    # --- Pad batch only to the (8,128) granularity (1024 points); reshape is free. ---
    n_pad = ((n + _ROW_ALIGN * _LANES - 1) // (_ROW_ALIGN * _LANES)) * (_ROW_ALIGN * _LANES)
    if n_pad != n:
        x = jnp.pad(x, ((0, n_pad - n), (0, 0)))
    rows = n_pad // _LANES                                            # multiple of 8
    xr = x.reshape(rows, _ROW_IN)                                     # row-major, no copy

    # --- Tile selection: MB-scale, sublane-aligned, clamped to the array. ---
    rt = max(_ROW_ALIGN, (int(rt) // _ROW_ALIGN) * _ROW_ALIGN)        # multiple of 8
    rt = min(rt, rows)
    grid = (pl.cdiv(rows, rt),)

    out = pl.pallas_call(
        _fused_affine_kernel,
        out_shape=jax.ShapeDtypeStruct((rows, _LANES), jnp.float32),
        grid=grid,
        in_specs=[
            # Folded bias: a single scalar resident in SMEM.
            pl.BlockSpec(memory_space=pltpu.MemorySpace.SMEM),
            # De-interleave matrix: same block every step -> stays resident in VMEM.
            pl.BlockSpec((_ROW_IN, _LANES), lambda i: (0, 0)),
            # Batch tile: (Rt, 256) sublane/lane-dense input rows.
            pl.BlockSpec((rt, _ROW_IN), lambda i: (i, 0)),
        ],
        # Lane-dense (Rt, 128) output tile (unmasked full-vreg stores).
        out_specs=pl.BlockSpec((rt, _LANES), lambda i: (i, 0)),
        compiler_params=pltpu.CompilerParams(
            # Independent batch tiles -> shard across v7x's two TensorCores.
            dimension_semantics=("parallel",),
            # ~12.5 MiB double-buffered working set; 32 MiB fits every generation.
            vmem_limit_bytes=32 * 1024 * 1024,
        ),
    )(b_eff, m, xr)

    res = out.reshape(n_pad)
    if n_pad != n:
        res = res[:n]
    return res.reshape(n, 1)


def init_params(key):
    # Deterministic synthetic init matching nn.Linear shapes:
    #   layer_1: weight (10, 2),  bias (10,)
    #   layer_2: weight (10, 10), bias (10,)
    #   layer_3: weight (1, 10),  bias (1,)
    k1, k2, k3, k4, k5, k6 = jax.random.split(key, 6)
    return {
        "w1": jax.random.normal(k1, (10, 2), jnp.float32) * 0.5,
        "b1": jax.random.normal(k2, (10,), jnp.float32) * 0.1,
        "w2": jax.random.normal(k3, (10, 10), jnp.float32) * 0.3,
        "b2": jax.random.normal(k4, (10,), jnp.float32) * 0.1,
        "w3": jax.random.normal(k5, (1, 10), jnp.float32) * 0.3,
        "b3": jax.random.normal(k6, (1,), jnp.float32) * 0.1,
    }


def _reference(x, params):
    h = x @ params["w1"].T + params["b1"]
    h = h @ params["w2"].T + params["b2"]
    return h @ params["w3"].T + params["b3"]


if __name__ == "__main__":
    key = jax.random.PRNGKey(0)
    pkey, xkey, xkey2 = jax.random.split(key, 3)
    params = init_params(pkey)

    # Small batch of 2-D "circle" points (in_features=2): single-tile path.
    x_small = jax.random.normal(xkey, (32, 2), jnp.float32)
    out_small = jax.block_until_ready(circle_model_v1_forward(x_small, params))
    ref_small = _reference(x_small, params)
    assert out_small.shape == (32, 1), out_small.shape
    assert jnp.allclose(out_small, ref_small, atol=1e-4, rtol=1e-4), "small-batch mismatch"

    # Ragged batch: exercises the 1024-point padding + slice-back path.
    x_big = jax.random.normal(xkey2, (4500, 2), jnp.float32)
    out_big = jax.block_until_ready(circle_model_v1_forward(x_big, params))
    ref_big = _reference(x_big, params)
    assert out_big.shape == (4500, 1), out_big.shape
    assert jnp.allclose(out_big, ref_big, atol=1e-4, rtol=1e-4), "ragged-batch mismatch"

    print("KERNEL_OK")
</pallas_src>

<mosaic_0001>
module attributes {stable_mosaic.version = 11 : i64} {
  func.func @_fused_affine_kernel(%arg0: i32, %arg1: memref<1xf32, #tpu.memory_space<smem>>, %arg2: memref<256x128xf32, #tpu.memory_space<vmem>>, %arg3: memref<8x256xf32, #tpu.memory_space<vmem>>, %arg4: memref<8x128xf32, #tpu.memory_space<vmem>>) attributes {dimension_semantics = [#tpu.dimension_semantics<parallel>], iteration_bounds = array<i64: 1>, scalar_prefetch = 0 : i64, scratch_operands = 0 : i64, tpu.core_type = #tpu.core_type<tc>, window_params = [{transform_indices = @transform_0, window_bounds = array<i64: 1>}, {pipeline_mode = #tpu.pipeline_mode<synchronous>, transform_indices = @transform_1, window_bounds = array<i64: 256, 128>}, {transform_indices = @transform_2, window_bounds = array<i64: 8, 256>}, {transform_indices = @transform_3, window_bounds = array<i64: 8, 128>}]} {
    %c0 = arith.constant 0 : index
    %c0_0 = arith.constant 0 : index
    %0 = vector.load %arg3[%c0, %c0_0] : memref<8x256xf32, #tpu.memory_space<vmem>>, vector<8x256xf32>
    %c0_1 = arith.constant 0 : index
    %c0_2 = arith.constant 0 : index
    %1 = vector.load %arg2[%c0_1, %c0_2] : memref<256x128xf32, #tpu.memory_space<vmem>>, vector<256x128xf32>
    %cst = arith.constant dense<0.000000e+00> : vector<8x128xf32>
    %2 = tpu.matmul %0, %1, %cst {dimension_numbers = #tpu.dot_dimension_numbers<[1], [0], [0], [1], [0, 0, 1, 1], [], []>} : vector<8x256xf32>, vector<256x128xf32>, vector<8x128xf32> -> vector<8x128xf32>
    %c0_3 = arith.constant 0 : index
    %3 = memref.load %arg1[%c0_3] : memref<1xf32, #tpu.memory_space<smem>>
    %4 = vector.broadcast %3 : f32 to vector<8x128xf32>
    %5 = arith.addf %2, %4 : vector<8x128xf32>
    %c0_4 = arith.constant 0 : index
    %c0_5 = arith.constant 0 : index
    %6 = vector.load %arg4[%c0_4, %c0_5] : memref<8x128xf32, #tpu.memory_space<vmem>>, vector<8x128xf32>
    tpu.vector_store %arg4[%c0_4, %c0_5], %5 {strides = array<i32>} : memref<8x128xf32, #tpu.memory_space<vmem>>, vector<8x128xf32>,
    return
  }
  func.func @transform_0(%arg0: i32) -> i32 {
    %c0_i32 = arith.constant 0 : i32
    %c0_i32_0 = arith.constant 0 : i32
    return %c0_i32 : i32
  }
  func.func @transform_1(%arg0: i32) -> (i32, i32) {
    %c0_i32 = arith.constant 0 : i32
    %c0_i32_0 = arith.constant 0 : i32
    %c0_i32_1 = arith.constant 0 : i32
    return %c0_i32, %c0_i32_0 : i32, i32
  }
  func.func @transform_2(%arg0: i32) -> (i32, i32) {
    %c0_i32 = arith.constant 0 : i32
    %c0_i32_0 = arith.constant 0 : i32
    return %arg0, %c0_i32 : i32, i32
  }
  func.func @transform_3(%arg0: i32) -> (i32, i32) {
    %c0_i32 = arith.constant 0 : i32
    %c0_i32_0 = arith.constant 0 : i32
    return %arg0, %c0_i32 : i32, i32
  }
}

</mosaic_0001>

<llo_original>
// kernel: circle_model_v1_forward.1
$region0: #{circle_model_v1_forward.1}
  #allocation0 [shape = 'u32[]', space=smem, size = 0x4, offset = 0x4, fixed_abs, tag = 'smem constant byte address 0x4 - core index']
  #allocation1 [shape = 'u32[72,128]{1,0:T(1,128)}', space=vmem, size = 0x9000, scoped, tag = 'internal scratch']
  #allocation2 [shape = 'f32[1]{0:T(128)S(6)}', space=smem, size = 0x200, scoped, tag = 'scoped memory for circle_model_v1_forward.1']
  %s0 = inlined_call_operand.<no memory space> [shape: f32[1], index: 0, kind: input, shape index: {}]
  %s1 = inlined_call_operand.vmem [shape: f32[256,128], index: 1, kind: input, shape index: {}]
  %s2 = inlined_call_operand.vmem [shape: f32[8,256], index: 2, kind: input, shape index: {}]
  %s3 = inlined_call_operand.vmem [shape: f32[8,128], index: 3, kind: output, shape index: {}]
  %s4 = sld [smem:[#allocation0]]
  $region22: #{circle_model_v1_forward.1} parent=0
    _
  %s6 = ssub.s32 1, %s4
  %s7 = scalar_select 0, %s6, %s4
  %8 = sst [smem:[#allocation2]] %s0
  // Predicated region
  $region2: #{circle_model_v1_forward.1} parent=0 // pred_check
    _
  $region3: #{circle_model_v1_forward.1} parent=0 // pred_check_branch
    %10 = sbr.rel (0) target = $region5
  $region4: #{circle_model_v1_forward.1} parent=0 // pred_region
    _
  $region5: #{circle_model_v1_forward.1} parent=0 // pred_fallthru
    _
  // Predicated region
  $region6: #{circle_model_v1_forward.1} parent=0 // pred_check
    _
  $region7: #{circle_model_v1_forward.1} parent=0 // pred_check_branch
    %12 = sbr.rel (0) target = $region9
  $region8: #{circle_model_v1_forward.1} parent=0 // pred_region
    _
  $region9: #{circle_model_v1_forward.1} parent=0 // pred_fallthru
    _
  // Predicated region
  $region10: #{circle_model_v1_forward.1} parent=0 // pred_check
    _
  $region11: #{circle_model_v1_forward.1} parent=0 // pred_check_branch
    %14 = sbr.rel (0) target = $region13
  $region12: #{circle_model_v1_forward.1} parent=0 // pred_region
    _
  $region13: #{circle_model_v1_forward.1} parent=0 // pred_fallthru
    _
  %v15 = vld [vmem:[%s2] sm:$0xff]
  %v16 = vld [vmem:[%s2 + $0x8] sm:$0xff]
  %v17 = vld [vmem:[%s1] sm:$0xff]
  %v18 = vld [vmem:[%s1 + $0x8] sm:$0xff]
  %v19 = vld [vmem:[%s1 + $0x10] sm:$0xff]
  %v20 = vld [vmem:[%s1 + $0x18] sm:$0xff]
  %v21 = vld [vmem:[%s1 + $0x20] sm:$0xff]
  %v22 = vld [vmem:[%s1 + $0x28] sm:$0xff]
  %v23 = vld [vmem:[%s1 + $0x30] sm:$0xff]
  %v24 = vld [vmem:[%s1 + $0x38] sm:$0xff]
  %v25 = vld [vmem:[%s1 + $0x40] sm:$0xff]
  %v26 = vld [vmem:[%s1 + $0x48] sm:$0xff]
  %v27 = vld [vmem:[%s1 + $0x50] sm:$0xff]
  %v28 = vld [vmem:[%s1 + $0x58] sm:$0xff]
  %v29 = vld [vmem:[%s1 + $0x60] sm:$0xff]
  %v30 = vld [vmem:[%s1 + $0x68] sm:$0xff]
  %v31 = vld [vmem:[%s1 + $0x70] sm:$0xff]
  %v32 = vld [vmem:[%s1 + $0x78] sm:$0xff]
  %v33 = vld [vmem:[%s1 + $0x80] sm:$0xff]
  %v34 = vld [vmem:[%s1 + $0x88] sm:$0xff]
  %v35 = vld [vmem:[%s1 + $0x90] sm:$0xff]
  %v36 = vld [vmem:[%s1 + $0x98] sm:$0xff]
  %v37 = vld [vmem:[%s1 + $0xa0] sm:$0xff]
  %v38 = vld [vmem:[%s1 + $0xa8] sm:$0xff]
  %v39 = vld [vmem:[%s1 + $0xb0] sm:$0xff]
  %v40 = vld [vmem:[%s1 + $0xb8] sm:$0xff]
  %v41 = vld [vmem:[%s1 + $0xc0] sm:$0xff]
  %v42 = vld [vmem:[%s1 + $0xc8] sm:$0xff]
  %v43 = vld [vmem:[%s1 + $0xd0] sm:$0xff]
  %v44 = vld [vmem:[%s1 + $0xd8] sm:$0xff]
  %v45 = vld [vmem:[%s1 + $0xe0] sm:$0xff]
  %v46 = vld [vmem:[%s1 + $0xe8] sm:$0xff]
  %v47 = vld [vmem:[%s1 + $0xf0] sm:$0xff]
  %v48 = vld [vmem:[%s1 + $0xf8] sm:$0xff]
  %s49 = sld [smem:[#allocation2]]
  %v50 = vstv %s49
  %51 = vmatpush.msra.mxu0 %v32
  %52 = vmatpush.msra.mxu0 %v31
  %53 = vmatpush.msra.mxu0 %v30
  %54 = vmatpush.msra.mxu0 %v29
  %55 = vmatpush.msra.mxu0 %v28
  %56 = vmatpush.msra.mxu0 %v27
  %57 = vmatpush.msra.mxu0 %v26
  %58 = vmatpush.msra.mxu0 %v25
  %59 = vmatpush.msra.mxu0 %v24
  %60 = vmatpush.msra.mxu0 %v23
  %61 = vmatpush.msra.mxu0 %v22
  %62 = vmatpush.msra.mxu0 %v21
  %63 = vmatpush.msra.mxu0 %v20
  %64 = vmatpush.msra.mxu0 %v19
  %65 = vmatpush.msra.mxu0 %v18
  %66 = vmatpush.msra.mxu0 %v17
  %67 = vmatmul.f32.gmra.mxu0 %v15
  %v68 = vpop.f32.mrf.mxu0
  %v69 = vadd.f32 %v50, %v68
  %70 = vdwg.mxu0
  %71 = vmatpush.msra.mxu0 %v48
  %72 = vmatpush.msra.mxu0 %v47
  %73 = vmatpush.msra.mxu0 %v46
  %74 = vmatpush.msra.mxu0 %v45
  %75 = vmatpush.msra.mxu0 %v44
  %76 = vmatpush.msra.mxu0 %v43
  %77 = vmatpush.msra.mxu0 %v42
  %78 = vmatpush.msra.mxu0 %v41
  %79 = vmatpush.msra.mxu0 %v40
  %80 = vmatpush.msra.mxu0 %v39
  %81 = vmatpush.msra.mxu0 %v38
  %82 = vmatpush.msra.mxu0 %v37
  %83 = vmatpush.msra.mxu0 %v36
  %84 = vmatpush.msra.mxu0 %v35
  %85 = vmatpush.msra.mxu0 %v34
  %86 = vmatpush.msra.mxu0 %v33
  %87 = vmatmul.f32.gmra.mxu0 %v16
  %v88 = vpop.f32.mrf.mxu0
  %v89 = vadd.f32 %v69, %v88
  %90 = vdwg.mxu0
  %91 = vst [vmem:[%s3] sm:$0xff] %v89
  // Predicated region
  $region14: #{circle_model_v1_forward.1} parent=0 // pred_check
    _
  $region15: #{circle_model_v1_forward.1} parent=0 // pred_check_branch
    %93 = sbr.rel (0) target = $region17
  $region16: #{circle_model_v1_forward.1} parent=0 // pred_region
    _
  $region17: #{circle_model_v1_forward.1} parent=0 // pred_fallthru
    _
  // Predicated region
  $region18: #{circle_model_v1_forward.1} parent=0 // pred_check
    _
  $region19: #{circle_model_v1_forward.1} parent=0 // pred_check_branch
    %95 = sbr.rel (0) target = $region21
  $region20: #{circle_model_v1_forward.1} parent=0 // pred_region
    _
  $region21: #{circle_model_v1_forward.1} parent=0 // pred_fallthru
    _

</llo_original>
